<compile_context>
chip_gen: v7x
topology: tpu7x:2x2x1
jax: 0.10.0
libtpu: 0.0.40
codegen_flags: <defaults>
</compile_context>

<pallas_src>
import functools

import jax
import jax.numpy as jnp
from jax import lax
from jax.experimental import pallas as pl
from jax.experimental.pallas import tpu as pltpu


def mamba_block_kernel(x_ref, rms_w_ref, wn_ref, bn_ref, conv_w_ref, conv_b_ref,
                       ws_ref, bs_ref, out_w_ref, out_b_ref, o_ref,
                       *, eps, bt, sl, dm, ns):
    D2 = 2 * dm
    M = bt * sl           # fused rows (Bt * L)
    W = bt * D2           # fused conv lane width (Bt * 2D)

    # Activations arrive in their original dtype; upcast once after the DMA.
    x = x_ref[...].reshape(M, dm).astype(jnp.float32)

    # ---- RMSNorm (f32) ------------------------------------------------------
    ms = jnp.mean(x * x, axis=-1, keepdims=True)
    xn = x * lax.rsqrt(ms + eps) * rms_w_ref[...]

    # ---- fused inp_proj | D residual proj: one bf16 matmul, f32 acc ---------
    proj = jnp.dot(xn.astype(jnp.bfloat16), wn_ref[...],
                   preferred_element_type=jnp.float32) + bn_ref[...]
    xp = proj[:, :D2]                                      # inp_proj(x_norm)

    # ---- Conv1d(seq_len, seq_len, k=3, pad=1) along the feature axis --------
    # Single lane-dense (3L, L) @ (L, Bt*2D) matmul for ALL fused batch
    # elements.  The +/-1 spatial shifts commute with the left matmul, so the
    # *outputs* are shifted with pltpu.roll (XLU) and masked at each D2-block
    # boundary (this also kills values that wrapped across batch blocks).
    if bt == 1:
        xp_t = xp                                          # already (L, 2D)
    else:
        xp_t = jnp.transpose(xp.reshape(bt, sl, D2), (1, 0, 2)).reshape(sl, W)
    y = jnp.dot(conv_w_ref[...], xp_t.astype(jnp.bfloat16),
                preferred_element_type=jnp.float32)        # (3L, Bt*2D)
    y0, y1, y2 = y[:sl], y[sl:2 * sl], y[2 * sl:]
    col = lax.broadcasted_iota(jnp.int32, (sl, W), 1) % D2
    row = lax.broadcasted_iota(jnp.int32, (sl, W), 0)
    left = jnp.where(col == 0, 0.0, pltpu.roll(y0, shift=1, axis=1))
    right = jnp.where(col == D2 - 1, 0.0, pltpu.roll(y2, shift=W - 1, axis=1))
    xc_t = left + y1 + right + conv_b_ref[...]             # bias (L,1) bcast
    xc_t = jnp.where(col <= row, xc_t, 0.0)                # tril(ones(L, 2D))
    if bt == 1:
        xc = xc_t                                          # (M, 2D)
    else:
        xc = jnp.transpose(xc_t.reshape(sl, bt, D2), (1, 0, 2)).reshape(M, D2)

    # ---- SiLU (sigmoid via tanh: one EUP push per element) ------------------
    xa = xc * (0.5 * (jnp.tanh(0.5 * xc) + 1.0))

    # ---- fused fc1 | fc2 | fc3 (delta | B | C): one lane-dense matmul -------
    s = jnp.dot(xa.astype(jnp.bfloat16), ws_ref[...],
                preferred_element_type=jnp.float32) + bs_ref[...]
    z = s[:, :D2]
    delta = jnp.maximum(z, 0.0) + jnp.log(1.0 + jnp.exp(-jnp.abs(z)))  # softplus
    Bm = s[:, D2:D2 + ns]
    Cm = s[:, D2 + ns:]

    # ---- S6 (h zero-initialized each forward -> dA*h term is exactly zero) --
    cbsum = jnp.sum(Bm * Cm, axis=-1, keepdims=True)       # (M, 1)
    x_ssm = xa * delta * cbsum

    # ---- residual gate silu(D(x_norm)) + combine + out_proj -----------------
    xr = proj[:, D2:]                                      # sliced only here
    x_res = xr * (0.5 * (jnp.tanh(0.5 * xr) + 1.0))
    comb = (x_ssm * x_res).astype(jnp.bfloat16)
    out = jnp.dot(comb, out_w_ref[...],
                  preferred_element_type=jnp.float32) + out_b_ref[...]
    o_ref[...] = out.astype(o_ref.dtype).reshape(bt, sl, dm)


def prepare_params(params, *, wdt=jnp.bfloat16):
    """One-time fusion/cast of weights that share an LHS (hoisted out of the
    per-forward path so no extra weight HBM round trips happen per call)."""
    L = params["conv_w"].shape[1]
    f32 = jnp.float32
    return dict(
        rms_w=params["rms_w"].astype(f32),
        wn=jnp.concatenate([params["w_in"], params["d_w"]], axis=1).astype(wdt),
        bn=jnp.concatenate([params["b_in"], params["d_b"]], axis=1).astype(f32),
        conv_w=params["conv_w"].reshape(3 * L, L).astype(wdt),
        conv_b=params["conv_b"].astype(f32),
        ws=jnp.concatenate([params["fc1_w"], params["fc2_w"], params["fc3_w"]],
                           axis=1).astype(wdt),
        bs=jnp.concatenate([params["fc1_b"], params["fc2_b"], params["fc3_b"]],
                           axis=1).astype(f32),
        out_w=params["out_w"].astype(wdt),
        out_b=params["out_b"].astype(f32),
    )


def _pick_batch_block(B, L, D, N, *, mxu_rows=256, act_budget_bytes=16 << 20):
    """Largest Bt with >= 2 grid steps (keeps v7x's second TensorCore busy),
    preferring an MXU-aligned Bt*L, with live f32 intermediates under a VMEM
    activation budget."""
    per_row_bytes = 4 * (24 * D + 2 * N)          # rough f32 live bytes per row
    m_cap = max(L, act_budget_bytes // max(per_row_bytes, 1))
    best, best_aligned = 1, None
    for d in range(1, B + 1):
        if B % d:
            continue
        if B >= 2 and B // d < 2:                 # keep >= 2 grid steps
            continue
        if d * L > m_cap:
            continue
        best = d
        if (d * L) % mxu_rows == 0:
            best_aligned = d
    return best_aligned if best_aligned is not None else best


def mamba_block(x, prep, *, eps=1e-5, attention_mask=None, batch_block=None):
    if attention_mask is not None:
        x = x * attention_mask[..., None].astype(x.dtype)
    B, L, D = x.shape
    D2 = 2 * D
    N = (prep["ws"].shape[1] - D2) // 2

    if batch_block is None:
        batch_block = _pick_batch_block(B, L, D, N)
    assert B % batch_block == 0
    Bt = batch_block

    def full(shape):
        return pl.BlockSpec(shape, lambda b, _n=len(shape): (0,) * _n)

    in_specs = [
        pl.BlockSpec((Bt, L, D), lambda b: (b, 0, 0)),      # x
        full((1, D)),                                       # rms_w
        full((D, 4 * D)), full((1, 4 * D)),                 # fused inp_proj | D
        full((3 * L, L)), full((L, 1)),                     # stacked conv + bias
        full((D2, D2 + 2 * N)), full((1, D2 + 2 * N)),      # fused fc1|fc2|fc3
        full((D2, D)), full((1, D)),                        # out_proj
    ]
    out_spec = pl.BlockSpec((Bt, L, D), lambda b: (b, 0, 0))

    # Advisory cost estimate so XLA schedules neighbouring ops around the call.
    M_total = B * L
    flops = int(2 * M_total * (D * 4 * D + D2 * (D2 + 2 * N) + D2 * D)
                + 2 * B * (3 * L) * L * D2)
    transcendentals = int(5 * M_total * D2)
    nbytes = lambda a: int(a.size) * int(a.dtype.itemsize)
    bytes_accessed = int(nbytes(x) + sum(nbytes(v) for v in prep.values())
                         + M_total * D * int(x.dtype.itemsize))

    kernel = functools.partial(mamba_block_kernel, eps=eps, bt=Bt, sl=L, dm=D, ns=N)
    return pl.pallas_call(
        kernel,
        out_shape=jax.ShapeDtypeStruct((B, L, D), x.dtype),
        grid_spec=pltpu.PrefetchScalarGridSpec(
            num_scalar_prefetch=0,
            grid=(B // Bt,),
            in_specs=in_specs,
            out_specs=out_spec,
        ),
        compiler_params=pltpu.CompilerParams(
            dimension_semantics=("parallel",),              # batch axis -> 2 TCs on v7x
            # 48 MiB leaves double-buffer + compiler-scratch headroom on v7x's
            # 64 MiB physical VMEM per TC; v5e/v6e (128 MiB) are unaffected.
            vmem_limit_bytes=48 * 1024 * 1024,
        ),
        cost_estimate=pl.CostEstimate(flops=flops,
                                      transcendentals=transcendentals,
                                      bytes_accessed=bytes_accessed),
    )(x, prep["rms_w"], prep["wn"], prep["bn"], prep["conv_w"], prep["conv_b"],
      prep["ws"], prep["bs"], prep["out_w"], prep["out_b"])


def init_params(key, L, D, N):
    """Deterministic PyTorch-style (uniform +/- 1/sqrt(fan_in)) init."""
    D2 = 2 * D
    ks = jax.random.split(key, 8)

    def linear(k, fan_in, fan_out):
        bound = 1.0 / (fan_in ** 0.5)
        k1, k2 = jax.random.split(k)
        w = jax.random.uniform(k1, (fan_in, fan_out), jnp.float32, -bound, bound)
        b = jax.random.uniform(k2, (1, fan_out), jnp.float32, -bound, bound)
        return w, b

    w_in, b_in = linear(ks[0], D, D2)
    out_w, _ = linear(ks[1], D2, D)
    out_b = jnp.ones((1, D), jnp.float32)          # nn.init.constant_(out_proj.bias, 1.0)
    d_w, d_b = linear(ks[2], D, D2)
    fc1_w, fc1_b = linear(ks[3], D2, D2)
    fc2_w, fc2_b = linear(ks[4], D2, N)
    fc3_w, fc3_b = linear(ks[5], D2, N)
    cbound = 1.0 / ((L * 3) ** 0.5)                # Conv1d fan_in = in_channels * k
    conv_w = jax.random.uniform(ks[6], (3, L, L), jnp.float32, -cbound, cbound)
    conv_b = jax.random.uniform(ks[7], (L, 1), jnp.float32, -cbound, cbound)
    rms_w = jnp.ones((1, D), jnp.float32)
    return dict(rms_w=rms_w, w_in=w_in, b_in=b_in, conv_w=conv_w, conv_b=conv_b,
                fc1_w=fc1_w, fc1_b=fc1_b, fc2_w=fc2_w, fc2_b=fc2_b,
                fc3_w=fc3_w, fc3_b=fc3_b, d_w=d_w, d_b=d_b,
                out_w=out_w, out_b=out_b)


def mamba_block_ref(x, p, eps=1e-5):
    """Pure-JAX f32 reference mirroring the PyTorch forward."""
    B, L, D = x.shape
    D2 = 2 * D
    xn = x * lax.rsqrt(jnp.mean(x * x, -1, keepdims=True) + eps) * p["rms_w"][0]
    xp = xn @ p["w_in"] + p["b_in"][0]
    xpad = jnp.pad(xp, ((0, 0), (0, 0), (1, 1)))
    w = p["conv_w"]
    xc = (jnp.einsum("oi,biw->bow", w[0], xpad[:, :, 0:D2])
          + jnp.einsum("oi,biw->bow", w[1], xpad[:, :, 1:D2 + 1])
          + jnp.einsum("oi,biw->bow", w[2], xpad[:, :, 2:D2 + 2])
          + p["conv_b"][:, 0][None, :, None])
    xc = xc * jnp.tril(jnp.ones((L, D2), jnp.float32))
    xa = xc * jax.nn.sigmoid(xc)
    Bm = xa @ p["fc2_w"] + p["fc2_b"][0]
    Cm = xa @ p["fc3_w"] + p["fc3_b"][0]
    delta = jax.nn.softplus(xa @ p["fc1_w"] + p["fc1_b"][0])
    x_ssm = xa * delta * jnp.sum(Bm * Cm, -1, keepdims=True)
    xr = xn @ p["d_w"] + p["d_b"][0]
    x_res = xr * jax.nn.sigmoid(xr)
    return (x_ssm * x_res) @ p["out_w"] + p["out_b"][0]


if __name__ == "__main__":
    batch, seq_len, d_model, state_size = 2, 8, 16, 16

    key = jax.random.PRNGKey(0)
    k_x, k_p = jax.random.split(key)
    x = jax.random.normal(k_x, (batch, seq_len, d_model), jnp.float32)
    params = init_params(k_p, seq_len, d_model, state_size)
    prep = prepare_params(params)          # one-time weight fusion + bf16 cast

    out = mamba_block(x, prep)
    out = jax.block_until_ready(out)

    ref = mamba_block_ref(x, params)
    assert out.shape == (batch, seq_len, d_model)
    # bf16 matmul operands (f32 MXU accumulation); all other math is exact f32,
    # so a bf16-consistent tolerance suffices.
    assert jnp.allclose(out, ref, atol=2e-2, rtol=2e-2), "mismatch vs reference"

    print("KERNEL_OK")
</pallas_src>

<mosaic_0001>
module attributes {stable_mosaic.version = 11 : i64} {
  func.func @mamba_block_kernel(%arg0: i32, %arg1: memref<1x8x16xf32, #tpu.memory_space<vmem>>, %arg2: memref<1x16xf32, #tpu.memory_space<vmem>>, %arg3: memref<16x64xbf16, #tpu.memory_space<vmem>>, %arg4: memref<1x64xf32, #tpu.memory_space<vmem>>, %arg5: memref<24x8xbf16, #tpu.memory_space<vmem>>, %arg6: memref<8x1xf32, #tpu.memory_space<vmem>>, %arg7: memref<32x64xbf16, #tpu.memory_space<vmem>>, %arg8: memref<1x64xf32, #tpu.memory_space<vmem>>, %arg9: memref<32x16xbf16, #tpu.memory_space<vmem>>, %arg10: memref<1x16xf32, #tpu.memory_space<vmem>>, %arg11: memref<1x8x16xf32, #tpu.memory_space<vmem>>) attributes {dimension_semantics = [#tpu.dimension_semantics<parallel>], iteration_bounds = array<i64: 2>, scalar_prefetch = 0 : i64, scratch_operands = 0 : i64, tpu.core_type = #tpu.core_type<tc>, window_params = [{transform_indices = @transform_0, window_bounds = array<i64: 1, 8, 16>}, {pipeline_mode = #tpu.pipeline_mode<synchronous>, transform_indices = @transform_1, window_bounds = array<i64: 1, 16>}, {pipeline_mode = #tpu.pipeline_mode<synchronous>, transform_indices = @transform_2, window_bounds = array<i64: 16, 64>}, {pipeline_mode = #tpu.pipeline_mode<synchronous>, transform_indices = @transform_3, window_bounds = array<i64: 1, 64>}, {pipeline_mode = #tpu.pipeline_mode<synchronous>, transform_indices = @transform_4, window_bounds = array<i64: 24, 8>}, {pipeline_mode = #tpu.pipeline_mode<synchronous>, transform_indices = @transform_5, window_bounds = array<i64: 8, 1>}, {pipeline_mode = #tpu.pipeline_mode<synchronous>, transform_indices = @transform_6, window_bounds = array<i64: 32, 64>}, {pipeline_mode = #tpu.pipeline_mode<synchronous>, transform_indices = @transform_7, window_bounds = array<i64: 1, 64>}, {pipeline_mode = #tpu.pipeline_mode<synchronous>, transform_indices = @transform_8, window_bounds = array<i64: 32, 16>}, {pipeline_mode = #tpu.pipeline_mode<synchronous>, transform_indices = @transform_9, window_bounds = array<i64: 1, 16>}, {transform_indices = @transform_10, window_bounds = array<i64: 1, 8, 16>}]} {
    %c0 = arith.constant 0 : index
    %c0_0 = arith.constant 0 : index
    %c0_1 = arith.constant 0 : index
    %0 = vector.load %arg1[%c0, %c0_0, %c0_1] : memref<1x8x16xf32, #tpu.memory_space<vmem>>, vector<1x8x16xf32>
    %1 = vector.shape_cast %0 : vector<1x8x16xf32> to vector<8x16xf32>
    %2 = arith.mulf %1, %1 : vector<8x16xf32>
    %cst = arith.constant dense<0.000000e+00> : vector<8xf32>
    %3 = vector.multi_reduction <add>, %2, %cst [1] : vector<8x16xf32> to vector<8xf32>
    %4 = vector.shape_cast %3 : vector<8xf32> to vector<8x1xf32>
    %cst_2 = arith.constant 1.600000e+01 : f32
    %5 = vector.broadcast %cst_2 : f32 to vector<8x1xf32>
    %6 = arith.divf %4, %5 : vector<8x1xf32>
    %cst_3 = arith.constant 9.99999974E-6 : f32
    %7 = vector.broadcast %cst_3 : f32 to vector<8x1xf32>
    %8 = arith.addf %6, %7 : vector<8x1xf32>
    %9 = math.rsqrt %8 : vector<8x1xf32>
    %10 = vector.broadcast %9 : vector<8x1xf32> to vector<8x16xf32>
    %11 = arith.mulf %1, %10 : vector<8x16xf32>
    %c0_4 = arith.constant 0 : index
    %c0_5 = arith.constant 0 : index
    %12 = vector.load %arg2[%c0_4, %c0_5] : memref<1x16xf32, #tpu.memory_space<vmem>>, vector<1x16xf32>
    %13 = vector.broadcast %12 : vector<1x16xf32> to vector<8x16xf32>
    %14 = arith.mulf %11, %13 : vector<8x16xf32>
    %15 = arith.truncf %14 : vector<8x16xf32> to vector<8x16xbf16>
    %c0_6 = arith.constant 0 : index
    %c0_7 = arith.constant 0 : index
    %16 = vector.load %arg3[%c0_6, %c0_7] : memref<16x64xbf16, #tpu.memory_space<vmem>>, vector<16x64xbf16>
    %cst_8 = arith.constant dense<0.000000e+00> : vector<8x64xf32>
    %17 = tpu.matmul %15, %16, %cst_8 {dimension_numbers = #tpu.dot_dimension_numbers<[1], [0], [0], [1], [0, 0, 1, 1], [], []>} : vector<8x16xbf16>, vector<16x64xbf16>, vector<8x64xf32> -> vector<8x64xf32>
    %c0_9 = arith.constant 0 : index
    %c0_10 = arith.constant 0 : index
    %18 = vector.load %arg4[%c0_9, %c0_10] : memref<1x64xf32, #tpu.memory_space<vmem>>, vector<1x64xf32>
    %19 = vector.broadcast %18 : vector<1x64xf32> to vector<8x64xf32>
    %20 = arith.addf %17, %19 : vector<8x64xf32>
    %21 = vector.extract_strided_slice %20 {offsets = [0, 0], sizes = [8, 32], strides = [1, 1]} : vector<8x64xf32> to vector<8x32xf32>
    %c0_11 = arith.constant 0 : index
    %c0_12 = arith.constant 0 : index
    %22 = vector.load %arg5[%c0_11, %c0_12] : memref<24x8xbf16, #tpu.memory_space<vmem>>, vector<24x8xbf16>
    %23 = arith.truncf %21 : vector<8x32xf32> to vector<8x32xbf16>
    %cst_13 = arith.constant dense<0.000000e+00> : vector<24x32xf32>
    %24 = tpu.matmul %22, %23, %cst_13 {dimension_numbers = #tpu.dot_dimension_numbers<[1], [0], [0], [1], [0, 0, 1, 1], [], []>} : vector<24x8xbf16>, vector<8x32xbf16>, vector<24x32xf32> -> vector<24x32xf32>
    %25 = vector.extract_strided_slice %24 {offsets = [0, 0], sizes = [8, 32], strides = [1, 1]} : vector<24x32xf32> to vector<8x32xf32>
    %26 = vector.extract_strided_slice %24 {offsets = [8, 0], sizes = [8, 32], strides = [1, 1]} : vector<24x32xf32> to vector<8x32xf32>
    %27 = vector.extract_strided_slice %24 {offsets = [16, 0], sizes = [8, 32], strides = [1, 1]} : vector<24x32xf32> to vector<8x32xf32>
    %28 = tpu.iota {dimensions = array<i32: 1>} : vector<8x32xi32>
    %c32_i32 = arith.constant 32 : i32
    %c0_i32 = arith.constant 0 : i32
    %29 = arith.cmpi eq, %c32_i32, %c0_i32 : i32
    %c1_i32 = arith.constant 1 : i32
    %30 = arith.select %29, %c1_i32, %c32_i32 : i32
    %31 = vector.broadcast %30 : i32 to vector<8x32xi32>
    %32 = arith.remsi %28, %31 : vector<8x32xi32>
    %c0_i32_14 = arith.constant 0 : i32
    %33 = vector.broadcast %c0_i32_14 : i32 to vector<8x32xi32>
    %34 = arith.cmpi ne, %32, %33 : vector<8x32xi32>
    %c0_i32_15 = arith.constant 0 : i32
    %35 = vector.broadcast %c0_i32_15 : i32 to vector<8x32xi32>
    %36 = arith.cmpi slt, %32, %35 : vector<8x32xi32>
    %c0_i32_16 = arith.constant 0 : i32
    %37 = arith.cmpi slt, %30, %c0_i32_16 : i32
    %38 = vector.broadcast %37 : i1 to vector<8x32xi1>
    %39 = vector.broadcast %38 : vector<8x32xi1> to vector<8x32xi1>
    %40 = arith.xori %36, %39 : vector<8x32xi1>
    %41 = arith.andi %40, %34 : vector<8x32xi1>
    %42 = vector.broadcast %30 : i32 to vector<8x32xi32>
    %43 = arith.addi %32, %42 : vector<8x32xi32>
    %44 = arith.select %41, %43, %32 : vector<8x32xi1>, vector<8x32xi32>
    %45 = tpu.iota {dimensions = array<i32: 0>} : vector<8x32xi32>
    %c0_i32_17 = arith.constant 0 : i32
    %46 = vector.broadcast %c0_i32_17 : i32 to vector<8x32xi32>
    %47 = arith.cmpi eq, %44, %46 : vector<8x32xi32>
    %c1_i32_18 = arith.constant 1 : i32
    %48 = tpu.dynamic_rotate %25 by %c1_i32_18 dim 1 : vector<8x32xf32>, i32 -> vector<8x32xf32>
    %cst_19 = arith.constant 0.000000e+00 : f32
    %49 = vector.broadcast %cst_19 : f32 to vector<8x32xf32>
    %50 = arith.select %47, %49, %48 : vector<8x32xi1>, vector<8x32xf32>
    %c31_i32 = arith.constant 31 : i32
    %51 = vector.broadcast %c31_i32 : i32 to vector<8x32xi32>
    %52 = arith.cmpi eq, %44, %51 : vector<8x32xi32>
    %c31_i32_20 = arith.constant 31 : i32
    %53 = tpu.dynamic_rotate %27 by %c31_i32_20 dim 1 : vector<8x32xf32>, i32 -> vector<8x32xf32>
    %cst_21 = arith.constant 0.000000e+00 : f32
    %54 = vector.broadcast %cst_21 : f32 to vector<8x32xf32>
    %55 = arith.select %52, %54, %53 : vector<8x32xi1>, vector<8x32xf32>
    %56 = arith.addf %50, %26 : vector<8x32xf32>
    %57 = arith.addf %56, %55 : vector<8x32xf32>
    %c0_22 = arith.constant 0 : index
    %c0_23 = arith.constant 0 : index
    %58 = vector.load %arg6[%c0_22, %c0_23] : memref<8x1xf32, #tpu.memory_space<vmem>>, vector<8x1xf32>
    %59 = vector.broadcast %58 : vector<8x1xf32> to vector<8x32xf32>
    %60 = arith.addf %57, %59 : vector<8x32xf32>
    %61 = arith.cmpi sle, %44, %45 : vector<8x32xi32>
    %cst_24 = arith.constant 0.000000e+00 : f32
    %62 = vector.broadcast %cst_24 : f32 to vector<8x32xf32>
    %63 = arith.select %61, %60, %62 : vector<8x32xi1>, vector<8x32xf32>
    %cst_25 = arith.constant 5.000000e-01 : f32
    %64 = vector.broadcast %cst_25 : f32 to vector<8x32xf32>
    %65 = arith.mulf %64, %63 : vector<8x32xf32>
    %66 = math.tanh %65 : vector<8x32xf32>
    %cst_26 = arith.constant 1.000000e+00 : f32
    %67 = vector.broadcast %cst_26 : f32 to vector<8x32xf32>
    %68 = arith.addf %66, %67 : vector<8x32xf32>
    %cst_27 = arith.constant 5.000000e-01 : f32
    %69 = vector.broadcast %cst_27 : f32 to vector<8x32xf32>
    %70 = arith.mulf %69, %68 : vector<8x32xf32>
    %71 = arith.mulf %63, %70 : vector<8x32xf32>
    %72 = arith.truncf %71 : vector<8x32xf32> to vector<8x32xbf16>
    %c0_28 = arith.constant 0 : index
    %c0_29 = arith.constant 0 : index
    %73 = vector.load %arg7[%c0_28, %c0_29] : memref<32x64xbf16, #tpu.memory_space<vmem>>, vector<32x64xbf16>
    %cst_30 = arith.constant dense<0.000000e+00> : vector<8x64xf32>
    %74 = tpu.matmul %72, %73, %cst_30 {dimension_numbers = #tpu.dot_dimension_numbers<[1], [0], [0], [1], [0, 0, 1, 1], [], []>} : vector<8x32xbf16>, vector<32x64xbf16>, vector<8x64xf32> -> vector<8x64xf32>
    %c0_31 = arith.constant 0 : index
    %c0_32 = arith.constant 0 : index
    %75 = vector.load %arg8[%c0_31, %c0_32] : memref<1x64xf32, #tpu.memory_space<vmem>>, vector<1x64xf32>
    %76 = vector.broadcast %75 : vector<1x64xf32> to vector<8x64xf32>
    %77 = arith.addf %74, %76 : vector<8x64xf32>
    %78 = vector.extract_strided_slice %77 {offsets = [0, 0], sizes = [8, 32], strides = [1, 1]} : vector<8x64xf32> to vector<8x32xf32>
    %cst_33 = arith.constant 0.000000e+00 : f32
    %79 = vector.broadcast %cst_33 : f32 to vector<8x32xf32>
    %80 = arith.maximumf %78, %79 : vector<8x32xf32>
    %81 = math.absf %78 : vector<8x32xf32>
    %cst_34 = arith.constant 0.000000e+00 : f32
    %82 = vector.broadcast %cst_34 : f32 to vector<8x32xf32>
    %83 = arith.subf %82, %81 : vector<8x32xf32>
    %84 = math.exp %83 : vector<8x32xf32>
    %cst_35 = arith.constant 1.000000e+00 : f32
    %85 = vector.broadcast %cst_35 : f32 to vector<8x32xf32>
    %86 = arith.addf %85, %84 : vector<8x32xf32>
    %87 = math.log %86 : vector<8x32xf32>
    %88 = arith.addf %80, %87 : vector<8x32xf32>
    %89 = vector.extract_strided_slice %77 {offsets = [0, 32], sizes = [8, 16], strides = [1, 1]} : vector<8x64xf32> to vector<8x16xf32>
    %90 = vector.extract_strided_slice %77 {offsets = [0, 48], sizes = [8, 16], strides = [1, 1]} : vector<8x64xf32> to vector<8x16xf32>
    %91 = arith.mulf %89, %90 : vector<8x16xf32>
    %cst_36 = arith.constant dense<0.000000e+00> : vector<8xf32>
    %92 = vector.multi_reduction <add>, %91, %cst_36 [1] : vector<8x16xf32> to vector<8xf32>
    %93 = vector.shape_cast %92 : vector<8xf32> to vector<8x1xf32>
    %94 = arith.mulf %71, %88 : vector<8x32xf32>
    %95 = vector.broadcast %93 : vector<8x1xf32> to vector<8x32xf32>
    %96 = arith.mulf %94, %95 : vector<8x32xf32>
    %97 = vector.extract_strided_slice %20 {offsets = [0, 32], sizes = [8, 32], strides = [1, 1]} : vector<8x64xf32> to vector<8x32xf32>
    %cst_37 = arith.constant 5.000000e-01 : f32
    %98 = vector.broadcast %cst_37 : f32 to vector<8x32xf32>
    %99 = arith.mulf %98, %97 : vector<8x32xf32>
    %100 = math.tanh %99 : vector<8x32xf32>
    %cst_38 = arith.constant 1.000000e+00 : f32
    %101 = vector.broadcast %cst_38 : f32 to vector<8x32xf32>
    %102 = arith.addf %100, %101 : vector<8x32xf32>
    %cst_39 = arith.constant 5.000000e-01 : f32
    %103 = vector.broadcast %cst_39 : f32 to vector<8x32xf32>
    %104 = arith.mulf %103, %102 : vector<8x32xf32>
    %105 = arith.mulf %97, %104 : vector<8x32xf32>
    %106 = arith.mulf %96, %105 : vector<8x32xf32>
    %107 = arith.truncf %106 : vector<8x32xf32> to vector<8x32xbf16>
    %c0_40 = arith.constant 0 : index
    %c0_41 = arith.constant 0 : index
    %108 = vector.load %arg9[%c0_40, %c0_41] : memref<32x16xbf16, #tpu.memory_space<vmem>>, vector<32x16xbf16>
    %cst_42 = arith.constant dense<0.000000e+00> : vector<8x16xf32>
    %109 = tpu.matmul %107, %108, %cst_42 {dimension_numbers = #tpu.dot_dimension_numbers<[1], [0], [0], [1], [0, 0, 1, 1], [], []>} : vector<8x32xbf16>, vector<32x16xbf16>, vector<8x16xf32> -> vector<8x16xf32>
    %c0_43 = arith.constant 0 : index
    %c0_44 = arith.constant 0 : index
    %110 = vector.load %arg10[%c0_43, %c0_44] : memref<1x16xf32, #tpu.memory_space<vmem>>, vector<1x16xf32>
    %111 = vector.broadcast %110 : vector<1x16xf32> to vector<8x16xf32>
    %112 = arith.addf %109, %111 : vector<8x16xf32>
    %113 = vector.shape_cast %112 : vector<8x16xf32> to vector<1x8x16xf32>
    %c0_45 = arith.constant 0 : index
    %c0_46 = arith.constant 0 : index
    %c0_47 = arith.constant 0 : index
    %114 = vector.load %arg11[%c0_45, %c0_46, %c0_47] : memref<1x8x16xf32, #tpu.memory_space<vmem>>, vector<1x8x16xf32>
    tpu.vector_store %arg11[%c0_45, %c0_46, %c0_47], %113 {strides = array<i32>} : memref<1x8x16xf32, #tpu.memory_space<vmem>>, vector<1x8x16xf32>,
    return
  }
  func.func @transform_0(%arg0: i32) -> (i32, i32, i32) {
    %c0_i32 = arith.constant 0 : i32
    %c0_i32_0 = arith.constant 0 : i32
    %c0_i32_1 = arith.constant 0 : i32
    return %arg0, %c0_i32, %c0_i32_0 : i32, i32, i32
  }
  func.func @transform_1(%arg0: i32) -> (i32, i32) {
    %c0_i32 = arith.constant 0 : i32
    %c0_i32_0 = arith.constant 0 : i32
    %c0_i32_1 = arith.constant 0 : i32
    return %c0_i32, %c0_i32_0 : i32, i32
  }
  func.func @transform_2(%arg0: i32) -> (i32, i32) {
    %c0_i32 = arith.constant 0 : i32
    %c0_i32_0 = arith.constant 0 : i32
    %c0_i32_1 = arith.constant 0 : i32
    return %c0_i32, %c0_i32_0 : i32, i32
  }
  func.func @transform_3(%arg0: i32) -> (i32, i32) {
    %c0_i32 = arith.constant 0 : i32
    %c0_i32_0 = arith.constant 0 : i32
    %c0_i32_1 = arith.constant 0 : i32
    return %c0_i32, %c0_i32_0 : i32, i32
  }
  func.func @transform_4(%arg0: i32) -> (i32, i32) {
    %c0_i32 = arith.constant 0 : i32
    %c0_i32_0 = arith.constant 0 : i32
    %c0_i32_1 = arith.constant 0 : i32
    return %c0_i32, %c0_i32_0 : i32, i32
  }
  func.func @transform_5(%arg0: i32) -> (i32, i32) {
    %c0_i32 = arith.constant 0 : i32
    %c0_i32_0 = arith.constant 0 : i32
    %c0_i32_1 = arith.constant 0 : i32
    return %c0_i32, %c0_i32_0 : i32, i32
  }
  func.func @transform_6(%arg0: i32) -> (i32, i32) {
    %c0_i32 = arith.constant 0 : i32
    %c0_i32_0 = arith.constant 0 : i32
    %c0_i32_1 = arith.constant 0 : i32
    return %c0_i32, %c0_i32_0 : i32, i32
  }
  func.func @transform_7(%arg0: i32) -> (i32, i32) {
    %c0_i32 = arith.constant 0 : i32
    %c0_i32_0 = arith.constant 0 : i32
    %c0_i32_1 = arith.constant 0 : i32
    return %c0_i32, %c0_i32_0 : i32, i32
  }
  func.func @transform_8(%arg0: i32) -> (i32, i32) {
    %c0_i32 = arith.constant 0 : i32
    %c0_i32_0 = arith.constant 0 : i32
    %c0_i32_1 = arith.constant 0 : i32
    return %c0_i32, %c0_i32_0 : i32, i32
  }
  func.func @transform_9(%arg0: i32) -> (i32, i32) {
    %c0_i32 = arith.constant 0 : i32
    %c0_i32_0 = arith.constant 0 : i32
    %c0_i32_1 = arith.constant 0 : i32
    return %c0_i32, %c0_i32_0 : i32, i32
  }
  func.func @transform_10(%arg0: i32) -> (i32, i32, i32) {
    %c0_i32 = arith.constant 0 : i32
    %c0_i32_0 = arith.constant 0 : i32
    %c0_i32_1 = arith.constant 0 : i32
    return %arg0, %c0_i32, %c0_i32_0 : i32, i32, i32
  }
}

</mosaic_0001>

<llo_original>
// kernel: tpu_custom_call.1
$region0: #{tpu_custom_call.1}
  #allocation0 [shape = 'u32[]', space=smem, size = 0x4, offset = 0x4, fixed_abs, tag = 'smem constant byte address 0x4 - core index']
  #allocation1 [shape = 'u32[144,128]{1,0:T(1,128)}', space=vmem, size = 0x12000, scoped, tag = 'internal scratch']
  %s0 = inlined_call_operand.vmem [shape: f32[2,8,16], index: 0, kind: input, shape index: {}]
  %s1 = inlined_call_operand.hbm [shape: f32[1,16], index: 1, kind: input, shape index: {}]
  %s2 = inlined_call_operand.vmem [shape: bf16[16,64], index: 2, kind: input, shape index: {}]
  %s3 = inlined_call_operand.vmem [shape: f32[1,64], index: 3, kind: input, shape index: {}]
  %s4 = inlined_call_operand.vmem [shape: bf16[24,8], index: 4, kind: input, shape index: {}]
  %s5 = inlined_call_operand.vmem [shape: f32[8,1], index: 5, kind: input, shape index: {}]
  %s6 = inlined_call_operand.vmem [shape: bf16[32,64], index: 6, kind: input, shape index: {}]
  %s7 = inlined_call_operand.vmem [shape: f32[1,64], index: 7, kind: input, shape index: {}]
  %s8 = inlined_call_operand.vmem [shape: bf16[32,16], index: 8, kind: input, shape index: {}]
  %s9 = inlined_call_operand.vmem [shape: f32[1,16], index: 9, kind: input, shape index: {}]
  %s10 = inlined_call_operand.hbm [shape: f32[2,8,16], index: 10, kind: output, shape index: {}]
  %s11 = sld [smem:[#allocation0]]
  $region77: #{tpu_custom_call.1} parent=0
    _
  %s13 = ssub.s32 1, %s11
  %s14 = scalar_select 0, %s13, %s11
  $region1: #{tpu_custom_call.1} parent=0
    #allocation2 [shape = 'u8[512]{0}', space=vmem, size = 0x400, scoped, tag = 'input window, operand 1, single buffered']
    #allocation3 [shape = 's32[2]{0}', space=sflag, size = 0x8, scoped, tag = 'scoped memory for tpu_custom_call.1']
    #allocation4 [shape = 's32[2]{0}', space=sflag, size = 0x8, scoped, tag = 'scoped memory for tpu_custom_call.1']
    #allocation5 [shape = 'u8[8192]{0}', space=vmem, size = 0x2000, scoped, tag = 'output window, operand 0']
    %15 = vsyncpa [#allocation3], 0
    %16 = vsyncpa [#allocation4], 0
    %s17 = scalar_lea.sflag [#allocation4], 1
    %18 = vsyncpa %s17, 0
    loop: start=0, step=1, limit=4
    $region2: #{tpu_custom_call.1} parent=1 // loop_pre_header
      _
    $region3: #{tpu_custom_call.1} parent=1 // loop_header
      %s20 = sphi 0, %s24
      %p21 = scmp.ge.s32.totalorder %s20, 4
      %s30 = sphi 0, %s32
      %s33 = sphi 0, %s30
      %s34 = sphi 0, %s33
      %s50 = sphi 0, %s34
      %s54 = sphi 0, %s54
      %s56 = sphi 0, %s54
      %s57 = sphi 0, %s56
      %s71 = sphi 0, %s57
      %s75 = sphi 0, %s75
      %s77 = sphi 0, %s75
      %s78 = sphi 0, %s77
      %s92 = sphi 0, %s78
      %s96 = sphi 0, %s96
      %s98 = sphi 0, %s96
      %s99 = sphi 0, %s98
      %s113 = sphi 0, %s99
      %s117 = sphi 0, %s117
      %s119 = sphi 0, %s117
      %s120 = sphi 0, %s119
      %s134 = sphi 0, %s120
      %s138 = sphi 0, %s138
      %s140 = sphi 0, %s138
      %s141 = sphi 0, %s140
      %s155 = sphi 0, %s141
      %s159 = sphi 0, %s159
      %s161 = sphi 0, %s159
      %s162 = sphi 0, %s161
      %s176 = sphi 0, %s162
      %s180 = sphi 0, %s180
      %s182 = sphi 0, %s180
      %s183 = sphi 0, %s182
      %s197 = sphi 0, %s183
      %s201 = sphi 0, %s201
      %s203 = sphi 0, %s201
      %s204 = sphi 0, %s203
      %s218 = sphi 0, %s204
      %s222 = sphi 0, %s222
      %s224 = sphi 0, %s222
      %s225 = sphi 0, %s224
      %s239 = sphi 0, %s225
      %s245 = sphi 0, %s247
      %s248 = sphi 0, %s245
      %s249 = sphi 0, %s248
      %s265 = sphi 0, %s249
    $region4: #{tpu_custom_call.1} parent=1 // loop_header_branch
      %23 = sbr.rel (%p21) target = $region8
    $region5: #{tpu_custom_call.1} parent=1 // loop_body
      %s25 = ssub.s32 %s20, 1
      %s26 = ssub.s32 %s20, 2
      %s27 = sadd.s32 %s20, 1
      %s28 = ssub.s32 %s20, %s27
      %p29 = scmp.eq.s32.totalorder %s28, 0
      %s31 = sadd.s32 %s30, 1
      %s32 = scalar_select %p29, %s30, %s31
      %p35 = pneg %p29
      %p36 = scmp.eq.s32.totalorder %s20, 1
      %p37 = por %p35, %p36
      %p38 = scmp.ne.s32.totalorder %s30, %s33
      %p39 = scmp.eq.s32.totalorder %s20, 0
      %p40 = por %p38, %p39
      %p41 = scmp.ne.s32.totalorder %s30, %s33
      %p42 = scmp.eq.s32.totalorder %s25, 1
      %p43 = por %p41, %p42
      %p44 = scmp.ne.s32.totalorder %s33, %s34
      %p45 = scmp.eq.s32.totalorder %s25, 0
      %p46 = por %p44, %p45
      %p47 = scmp.ne.s32.totalorder %s33, %s34
      %p48 = scmp.eq.s32.totalorder %s26, 1
      %p49 = por %p47, %p48
      %p51 = scmp.ne.s32.totalorder %s34, %s50
      %p52 = scmp.eq.s32.totalorder %s26, 0
      %p53 = por %p51, %p52
      %s55 = sadd.s32 %s54, 1
      %p58 = scmp.eq.s32.totalorder %s20, 1
      %p59 = scmp.ne.s32.totalorder %s54, %s56
      %p60 = scmp.eq.s32.totalorder %s20, 0
      %p61 = por %p59, %p60
      %p62 = scmp.ne.s32.totalorder %s54, %s56
      %p63 = scmp.eq.s32.totalorder %s25, 1
      %p64 = por %p62, %p63
      %p65 = scmp.ne.s32.totalorder %s56, %s57
      %p66 = scmp.eq.s32.totalorder %s25, 0
      %p67 = por %p65, %p66
      %p68 = scmp.ne.s32.totalorder %s56, %s57
      %p69 = scmp.eq.s32.totalorder %s26, 1
      %p70 = por %p68, %p69
      %p72 = scmp.ne.s32.totalorder %s57, %s71
      %p73 = scmp.eq.s32.totalorder %s26, 0
      %p74 = por %p72, %p73
      %s76 = sadd.s32 %s75, 1
      %p79 = scmp.eq.s32.totalorder %s20, 1
      %p80 = scmp.ne.s32.totalorder %s75, %s77
      %p81 = scmp.eq.s32.totalorder %s20, 0
      %p82 = por %p80, %p81
      %p83 = scmp.ne.s32.totalorder %s75, %s77
      %p84 = scmp.eq.s32.totalorder %s25, 1
      %p85 = por %p83, %p84
      %p86 = scmp.ne.s32.totalorder %s77, %s78
      %p87 = scmp.eq.s32.totalorder %s25, 0
      %p88 = por %p86, %p87
      %p89 = scmp.ne.s32.totalorder %s77, %s78
      %p90 = scmp.eq.s32.totalorder %s26, 1
      %p91 = por %p89, %p90
      %p93 = scmp.ne.s32.totalorder %s78, %s92
      %p94 = scmp.eq.s32.totalorder %s26, 0
      %p95 = por %p93, %p94
      %s97 = sadd.s32 %s96, 1
      %p100 = scmp.eq.s32.totalorder %s20, 1
      %p101 = scmp.ne.s32.totalorder %s96, %s98
      %p102 = scmp.eq.s32.totalorder %s20, 0
      %p103 = por %p101, %p102
      %p104 = scmp.ne.s32.totalorder %s96, %s98
      %p105 = scmp.eq.s32.totalorder %s25, 1
      %p106 = por %p104, %p105
      %p107 = scmp.ne.s32.totalorder %s98, %s99
      %p108 = scmp.eq.s32.totalorder %s25, 0
      %p109 = por %p107, %p108
      %p110 = scmp.ne.s32.totalorder %s98, %s99
      %p111 = scmp.eq.s32.totalorder %s26, 1
      %p112 = por %p110, %p111
      %p114 = scmp.ne.s32.totalorder %s99, %s113
      %p115 = scmp.eq.s32.totalorder %s26, 0
      %p116 = por %p114, %p115
      %s118 = sadd.s32 %s117, 1
      %p121 = scmp.eq.s32.totalorder %s20, 1
      %p122 = scmp.ne.s32.totalorder %s117, %s119
      %p123 = scmp.eq.s32.totalorder %s20, 0
      %p124 = por %p122, %p123
      %p125 = scmp.ne.s32.totalorder %s117, %s119
      %p126 = scmp.eq.s32.totalorder %s25, 1
      %p127 = por %p125, %p126
      %p128 = scmp.ne.s32.totalorder %s119, %s120
      %p129 = scmp.eq.s32.totalorder %s25, 0
      %p130 = por %p128, %p129
      %p131 = scmp.ne.s32.totalorder %s119, %s120
      %p132 = scmp.eq.s32.totalorder %s26, 1
      %p133 = por %p131, %p132
      %p135 = scmp.ne.s32.totalorder %s120, %s134
      %p136 = scmp.eq.s32.totalorder %s26, 0
      %p137 = por %p135, %p136
      %s139 = sadd.s32 %s138, 1
      %p142 = scmp.eq.s32.totalorder %s20, 1
      %p143 = scmp.ne.s32.totalorder %s138, %s140
      %p144 = scmp.eq.s32.totalorder %s20, 0
      %p145 = por %p143, %p144
      %p146 = scmp.ne.s32.totalorder %s138, %s140
      %p147 = scmp.eq.s32.totalorder %s25, 1
      %p148 = por %p146, %p147
      %p149 = scmp.ne.s32.totalorder %s140, %s141
      %p150 = scmp.eq.s32.totalorder %s25, 0
      %p151 = por %p149, %p150
      %p152 = scmp.ne.s32.totalorder %s140, %s141
      %p153 = scmp.eq.s32.totalorder %s26, 1
      %p154 = por %p152, %p153
      %p156 = scmp.ne.s32.totalorder %s141, %s155
      %p157 = scmp.eq.s32.totalorder %s26, 0
      %p158 = por %p156, %p157
      %s160 = sadd.s32 %s159, 1
      %p163 = scmp.eq.s32.totalorder %s20, 1
      %p164 = scmp.ne.s32.totalorder %s159, %s161
      %p165 = scmp.eq.s32.totalorder %s20, 0
      %p166 = por %p164, %p165
      %p167 = scmp.ne.s32.totalorder %s159, %s161
      %p168 = scmp.eq.s32.totalorder %s25, 1
      %p169 = por %p167, %p168
      %p170 = scmp.ne.s32.totalorder %s161, %s162
      %p171 = scmp.eq.s32.totalorder %s25, 0
      %p172 = por %p170, %p171
      %p173 = scmp.ne.s32.totalorder %s161, %s162
      %p174 = scmp.eq.s32.totalorder %s26, 1
      %p175 = por %p173, %p174
      %p177 = scmp.ne.s32.totalorder %s162, %s176
      %p178 = scmp.eq.s32.totalorder %s26, 0
      %p179 = por %p177, %p178
      %s181 = sadd.s32 %s180, 1
      %p184 = scmp.eq.s32.totalorder %s20, 1
      %p185 = scmp.ne.s32.totalorder %s180, %s182
      %p186 = scmp.eq.s32.totalorder %s20, 0
      %p187 = por %p185, %p186
      %p188 = scmp.ne.s32.totalorder %s180, %s182
      %p189 = scmp.eq.s32.totalorder %s25, 1
      %p190 = por %p188, %p189
      %p191 = scmp.ne.s32.totalorder %s182, %s183
      %p192 = scmp.eq.s32.totalorder %s25, 0
      %p193 = por %p191, %p192
      %p194 = scmp.ne.s32.totalorder %s182, %s183
      %p195 = scmp.eq.s32.totalorder %s26, 1
      %p196 = por %p194, %p195
      %p198 = scmp.ne.s32.totalorder %s183, %s197
      %p199 = scmp.eq.s32.totalorder %s26, 0
      %p200 = por %p198, %p199
      %s202 = sadd.s32 %s201, 1
      %p205 = scmp.eq.s32.totalorder %s20, 1
      %p206 = scmp.ne.s32.totalorder %s201, %s203
      %p207 = scmp.eq.s32.totalorder %s20, 0
      %p208 = por %p206, %p207
      %p209 = scmp.ne.s32.totalorder %s201, %s203
      %p210 = scmp.eq.s32.totalorder %s25, 1
      %p211 = por %p209, %p210
      %p212 = scmp.ne.s32.totalorder %s203, %s204
      %p213 = scmp.eq.s32.totalorder %s25, 0
      %p214 = por %p212, %p213
      %p215 = scmp.ne.s32.totalorder %s203, %s204
      %p216 = scmp.eq.s32.totalorder %s26, 1
      %p217 = por %p215, %p216
      %p219 = scmp.ne.s32.totalorder %s204, %s218
      %p220 = scmp.eq.s32.totalorder %s26, 0
      %p221 = por %p219, %p220
      %s223 = sadd.s32 %s222, 1
      %p226 = scmp.eq.s32.totalorder %s20, 1
      %p227 = scmp.ne.s32.totalorder %s222, %s224
      %p228 = scmp.eq.s32.totalorder %s20, 0
      %p229 = por %p227, %p228
      %p230 = scmp.ne.s32.totalorder %s222, %s224
      %p231 = scmp.eq.s32.totalorder %s25, 1
      %p232 = por %p230, %p231
      %p233 = scmp.ne.s32.totalorder %s224, %s225
      %p234 = scmp.eq.s32.totalorder %s25, 0
      %p235 = por %p233, %p234
      %p236 = scmp.ne.s32.totalorder %s224, %s225
      %p237 = scmp.eq.s32.totalorder %s26, 1
      %p238 = por %p236, %p237
      %p240 = scmp.ne.s32.totalorder %s225, %s239
      %p241 = scmp.eq.s32.totalorder %s26, 0
      %p242 = por %p240, %p241
      %s243 = ssub.s32 %s20, %s27
      %p244 = scmp.eq.s32.totalorder %s243, 0
      %s246 = sadd.s32 %s245, 1
      %s247 = scalar_select %p244, %s245, %s246
      %p250 = pneg %p244
      %p251 = scmp.eq.s32.totalorder %s20, 1
      %p252 = por %p250, %p251
      %p253 = scmp.ne.s32.totalorder %s245, %s248
      %p254 = scmp.eq.s32.totalorder %s20, 0
      %p255 = por %p253, %p254
      %p256 = scmp.ne.s32.totalorder %s245, %s248
      %p257 = scmp.eq.s32.totalorder %s25, 1
      %p258 = por %p256, %p257
      %p259 = scmp.ne.s32.totalorder %s248, %s249
      %p260 = scmp.eq.s32.totalorder %s25, 0
      %p261 = por %p259, %p260
      %p262 = scmp.ne.s32.totalorder %s248, %s249
      %p263 = scmp.eq.s32.totalorder %s26, 1
      %p264 = por %p262, %p263
      %p266 = scmp.ne.s32.totalorder %s249, %s265
      %p267 = scmp.eq.s32.totalorder %s26, 0
      %p268 = por %p266, %p267
      %p269 = scmp.le.s32.totalorder 1, %s20
      %p270 = scmp.lt.s32.totalorder %s20, 3
      %p271 = pnand %p269, %p270
      %p272 = pneg %p271
      // Predicated region
      $region9: #{tpu_custom_call.1} parent=5 // pred_check
        _
      $region10: #{tpu_custom_call.1} parent=5 // pred_check_branch
        %274 = sbr.rel (%p271) target = $region12
      $region11: #{tpu_custom_call.1} parent=5 // pred_region
        %s275 = ssub.s32 %s20, 1
        // Predicated region
        $region13: #{tpu_custom_call.1} parent=11 // pred_check
          %p276 = pneg %p67
        $region14: #{tpu_custom_call.1} parent=11 // pred_check_branch
          %278 = sbr.rel (%p276) target = $region16
        $region15: #{tpu_custom_call.1} parent=11 // pred_region
          %s280 = ssub.s32 16, 16
          %281 = vsyncadd [#allocation3], %s280
          %s283 = sshll.u32 [#allocation2], 4
          %s284 = int_to_ptr.vmem [resolvable:$true] %s283
          %286 = dma.hbm_to_vmem [thread:$0]  %s1, 16, %s284, [#allocation3]
        $region16: #{tpu_custom_call.1} parent=11 // pred_fallthru
          _
        // Predicated region
        $region17: #{tpu_custom_call.1} parent=11 // pred_check
          %p287 = pneg %p88
        $region18: #{tpu_custom_call.1} parent=11 // pred_check_branch
          %289 = sbr.rel (%p287) target = $region20
        $region19: #{tpu_custom_call.1} parent=11 // pred_region
          _
        $region20: #{tpu_custom_call.1} parent=11 // pred_fallthru
          _
        // Predicated region
        $region21: #{tpu_custom_call.1} parent=11 // pred_check
          %p290 = pneg %p109
        $region22: #{tpu_custom_call.1} parent=11 // pred_check_branch
          %292 = sbr.rel (%p290) target = $region24
        $region23: #{tpu_custom_call.1} parent=11 // pred_region
          _
        $region24: #{tpu_custom_call.1} parent=11 // pred_fallthru
          _
        // Predicated region
        $region25: #{tpu_custom_call.1} parent=11 // pred_check
          %p293 = pneg %p130
        $region26: #{tpu_custom_call.1} parent=11 // pred_check_branch
          %295 = sbr.rel (%p293) target = $region28
        $region27: #{tpu_custom_call.1} parent=11 // pred_region
          _
        $region28: #{tpu_custom_call.1} parent=11 // pred_fallthru
          _
        // Predicated region
        $region29: #{tpu_custom_call.1} parent=11 // pred_check
          %p296 = pneg %p151
        $region30: #{tpu_custom_call.1} parent=11 // pred_check_branch
          %298 = sbr.rel (%p296) target = $region32
        $region31: #{tpu_custom_call.1} parent=11 // pred_region
          _
        $region32: #{tpu_custom_call.1} parent=11 // pred_fallthru
          _
        // Predicated region
        $region33: #{tpu_custom_call.1} parent=11 // pred_check
          %p299 = pneg %p172
        $region34: #{tpu_custom_call.1} parent=11 // pred_check_branch
          %301 = sbr.rel (%p299) target = $region36
        $region35: #{tpu_custom_call.1} parent=11 // pred_region
          _
        $region36: #{tpu_custom_call.1} parent=11 // pred_fallthru
          _
        // Predicated region
        $region37: #{tpu_custom_call.1} parent=11 // pred_check
          %p302 = pneg %p193
        $region38: #{tpu_custom_call.1} parent=11 // pred_check_branch
          %304 = sbr.rel (%p302) target = $region40
        $region39: #{tpu_custom_call.1} parent=11 // pred_region
          _
        $region40: #{tpu_custom_call.1} parent=11 // pred_fallthru
          _
        // Predicated region
        $region41: #{tpu_custom_call.1} parent=11 // pred_check
          %p305 = pneg %p214
        $region42: #{tpu_custom_call.1} parent=11 // pred_check_branch
          %307 = sbr.rel (%p305) target = $region44
        $region43: #{tpu_custom_call.1} parent=11 // pred_region
          _
        $region44: #{tpu_custom_call.1} parent=11 // pred_fallthru
          _
        // Predicated region
        $region45: #{tpu_custom_call.1} parent=11 // pred_check
          %p308 = pneg %p235
        $region46: #{tpu_custom_call.1} parent=11 // pred_check_branch
          %310 = sbr.rel (%p308) target = $region48
        $region47: #{tpu_custom_call.1} parent=11 // pred_region
          _
        $region48: #{tpu_custom_call.1} parent=11 // pred_fallthru
          _
      $region12: #{tpu_custom_call.1} parent=5 // pred_fallthru
        _
      %p311 = scmp.lt.s32.totalorder %s20, 2
      // Predicated region
      $region49: #{tpu_custom_call.1} parent=5 // pred_check
        %p312 = pneg %p311
      $region50: #{tpu_custom_call.1} parent=5 // pred_check_branch
        %314 = sbr.rel (%p312) target = $region52
      $region51: #{tpu_custom_call.1} parent=5 // pred_region
        // Predicated region
        $region53: #{tpu_custom_call.1} parent=51 // pred_check
          %p315 = pneg %p40
        $region54: #{tpu_custom_call.1} parent=51 // pred_check_branch
          %317 = sbr.rel (%p315) target = $region56
        $region55: #{tpu_custom_call.1} parent=51 // pred_region
          %p318 = scmp.lt.s32.totalorder %s20, 1
          %s319 = scalar_select %p318, %s20, 1
          %s320 = smul.addr %s319, 8
          %s321 = scalar_lea.vmem %s0, %s320
        $region56: #{tpu_custom_call.1} parent=51 // pred_fallthru
          _
      $region52: #{tpu_custom_call.1} parent=5 // pred_fallthru
        _
      %p322 = scmp.le.s32.totalorder 1, %s20
      %p323 = scmp.lt.s32.totalorder %s20, 3
      %p324 = pnand %p322, %p323
      %p325 = pneg %p324
      // Predicated region
      $region57: #{tpu_custom_call.1} parent=5 // pred_check
        _
      $region58: #{tpu_custom_call.1} parent=5 // pred_check_branch
        %327 = sbr.rel (%p324) target = $region60
      $region59: #{tpu_custom_call.1} parent=5 // pred_region
        %s328 = ssub.s32 %s20, 1
        // Predicated region
        $region61: #{tpu_custom_call.1} parent=59 // pred_check
          %p329 = pneg %p67
        $region62: #{tpu_custom_call.1} parent=59 // pred_check_branch
          %331 = sbr.rel (%p329) target = $region64
        $region63: #{tpu_custom_call.1} parent=59 // pred_region
          %332 = dma.done [#allocation3], 16
        $region64: #{tpu_custom_call.1} parent=59 // pred_fallthru
          _
        %p333 = scmp.lt.s32.totalorder %s25, 1
        %s334 = scalar_select %p333, %s25, 1
        %s335 = smul.addr %s334, 8
        %s336 = scalar_lea.vmem %s0, %s335
        %p337 = pneg %p46
        %p338 = pneg %p43
        %p339 = pneg %p67
        %p340 = pneg %p64
        %p341 = pneg %p88
        %p342 = pneg %p85
        %p343 = pneg %p109
        %p344 = pneg %p106
        %p345 = pneg %p130
        %p346 = pneg %p127
        %p347 = pneg %p151
        %p348 = pneg %p148
        %p349 = pneg %p172
        %p350 = pneg %p169
        %p351 = pneg %p193
        %p352 = pneg %p190
        %p353 = pneg %p214
        %p354 = pneg %p211
        %p355 = pneg %p235
        %p356 = pneg %p232
        %p357 = pneg %p261
        %p358 = pneg %p258
        %s359 = sand.u32 %s248, 1
        %s360 = scalar_lea.sflag [#allocation4], %s359
        %s361 = sand.u32 %s248, 1
        %s362 = smul.addr %s361, 8
        %s363 = scalar_lea.vmem [#allocation5], %s362
        %p364 = scmp.lt.s32.totalorder %s25, 1
        %s365 = scalar_select %p364, %s25, 1
        %s366 = smul.addr %s365, 8
        %s367 = scalar_lea.vmem %s0, %s366
        %v369 = vld [vmem:[%s367] sm:$0xff]
        %v370 = vmul.f32 %v369, %v369
        %vm371 = vcmask 130048
        %v372 = vsel %vm371, %v370, 0.0
        %373 = vadd.xlane.f32.xlu0 %v372
        %v374 = vpop.xlane.xlu0 %373
        %v375 = vrcp.pop 16.0
        %v376 = vmul.f32 %v374, %v375
        %v377 = vadd.f32 %v376, 1e-05
        %v378 = vrsqrt.pop %v377
        %v379 = vmul.f32 %v369, %v378
        %v380 = vld [vmem:[#allocation2] sm:$0x1]
        %v382 = vlaneseq
        %v383 = vshrl.u32 %v382, 7
        %v384 = vsub.s32 0, %v383
        %v385 = vrot.slane %v380, %v384
        %v387 = vmul.f32 %v379, %v385
        %v388 = vpack.c.bf16 %v387, %v387
        %v389 = vld [vmem:[%s2] sm:$0xf]
        %v390 = vld [vmem:[%s2 + $0x4] sm:$0xf]
        %v391 = vld [vmem:[%s3] sm:$0x1]
        %v393 = vlaneseq
        %v394 = vshrl.u32 %v393, 7
        %v395 = vsub.s32 0, %v394
        %v396 = vrot.slane %v391, %v395
        %v400 = vunpack.c.l.b16 %v389
        %v401 = vunpack.c.l.b16 %v390
        %v402 = vpack.c.b16 %v401, %v400
        %v405 = vsel %vm371, %v388, 0
        %407 = vmatprep.subr.bf16.mxu0 0
        %408 = vmatpush1.bf16.msra.mxu0 %v402
        %409 = vmatprep.subr.bf16.mxu0 0
        %410 = vmatpush1.bf16.msra.mxu0 0
        %411 = vmatprep.subr.bf16.mxu0 0
        %412 = vmatpush1.bf16.msra.mxu0 0
        %413 = vmatprep.subr.bf16.mxu0 0
        %414 = vmatpush1.bf16.msra.mxu0 0
        %415 = vmatprep.subr.bf16.mxu0 0
        %416 = vmatpush1.bf16.msra.mxu0 0
        %417 = vmatprep.subr.bf16.mxu0 0
        %418 = vmatpush1.bf16.msra.mxu0 0
        %419 = vmatprep.subr.bf16.mxu0 0
        %420 = vmatpush1.bf16.msra.mxu0 0
        %421 = vmatprep.subr.bf16.mxu0 0
        %422 = vmatpush1.bf16.msra.mxu0 0
        %423 = vmatprep.subr.bf16.mxu0 0
        %424 = vmatpush1.bf16.msra.mxu0 0
        %425 = vmatprep.subr.bf16.mxu0 0
        %426 = vmatpush1.bf16.msra.mxu0 0
        %427 = vmatprep.subr.bf16.mxu0 0
        %428 = vmatpush1.bf16.msra.mxu0 0
        %429 = vmatprep.subr.bf16.mxu0 0
        %430 = vmatpush1.bf16.msra.mxu0 0
        %431 = vmatprep.subr.bf16.mxu0 0
        %432 = vmatpush1.bf16.msra.mxu0 0
        %433 = vmatprep.subr.bf16.mxu0 0
        %434 = vmatpush1.bf16.msra.mxu0 0
        %435 = vmatprep.subr.bf16.mxu0 0
        %436 = vmatpush1.bf16.msra.mxu0 0
        %437 = vmatprep.subr.bf16.mxu0 0
        %438 = vmatpush1.bf16.msra.mxu0 0
        %439 = vmatprep.mubr.bf16.mxu0 0
        %440 = vmatmul.mubr.bf16.gmra.mrb[0].mxu0 %v405
        %v441 = vpop.f32.mrb[0].mxu0
        %v442 = vadd.f32 %v396, %v441
        %v443 = vpop.f32.mrb[0].mxu0
        %v444 = vpop.f32.mrb[0].mxu0
        %v445 = vpop.f32.mrb[0].mxu0
        %446 = vdwg.mxu0
        %v447 = vld [vmem:[%s4] sm:$0xf]
        %v448 = vld [vmem:[%s4 + $0x4] sm:$0xf]
        %v449 = vld [vmem:[%s4 + $0x8] sm:$0xf]
        %v450 = vpack.c.bf16 %v442, %v442
        %v454 = vunpack.c.l.b16 %v447
        %v455 = vunpack.c.l.b16 %v448
        %v456 = vunpack.c.l.b16 %v449
        %v457 = vpack.c.b16 %v455, %v454
        %v458 = vpack.c.b16 %v456, %v456
        %vm459 = vcmask 64512
        %v461 = vsel %vm459, %v457, 0
        %v464 = vsel %vm459, %v458, 0
        %vm466 = vcmask 1043456
        %v468 = vsel %vm466, %v450, 0
        %470 = vmatprep.subr.bf16.mxu0 0
        %471 = vmatpush1.bf16.msra.mxu0 %v468
        %472 = vmatprep.subr.bf16.mxu0 0
        %473 = vmatpush1.bf16.msra.mxu0 0
        %474 = vmatprep.subr.bf16.mxu0 0
        %475 = vmatpush1.bf16.msra.mxu0 0
        %476 = vmatprep.subr.bf16.mxu0 0
        %477 = vmatpush1.bf16.msra.mxu0 0
        %478 = vmatprep.subr.bf16.mxu0 0
        %479 = vmatpush1.bf16.msra.mxu0 0
        %480 = vmatprep.subr.bf16.mxu0 0
        %481 = vmatpush1.bf16.msra.mxu0 0
        %482 = vmatprep.subr.bf16.mxu0 0
        %483 = vmatpush1.bf16.msra.mxu0 0
        %484 = vmatprep.subr.bf16.mxu0 0
        %485 = vmatpush1.bf16.msra.mxu0 0
        %486 = vmatprep.subr.bf16.mxu0 0
        %487 = vmatpush1.bf16.msra.mxu0 0
        %488 = vmatprep.subr.bf16.mxu0 0
        %489 = vmatpush1.bf16.msra.mxu0 0
        %490 = vmatprep.subr.bf16.mxu0 0
        %491 = vmatpush1.bf16.msra.mxu0 0
        %492 = vmatprep.subr.bf16.mxu0 0
        %493 = vmatpush1.bf16.msra.mxu0 0
        %494 = vmatprep.subr.bf16.mxu0 0
        %495 = vmatpush1.bf16.msra.mxu0 0
        %496 = vmatprep.subr.bf16.mxu0 0
        %497 = vmatpush1.bf16.msra.mxu0 0
        %498 = vmatprep.subr.bf16.mxu0 0
        %499 = vmatpush1.bf16.msra.mxu0 0
        %500 = vmatprep.subr.bf16.mxu0 0
        %501 = vmatpush1.bf16.msra.mxu0 0
        %502 = vmatprep.mubr.bf16.mxu0 0
        %503 = vmatmul.mubr.bf16.gmra.mrb[0].mxu0 %v461
        %v504 = vpop.f32.mrb[0].mxu0
        %v505 = vadd.f32 0.0, %v504
        %v506 = vpop.f32.mrb[0].mxu0
        %v507 = vpop.f32.mrb[0].mxu0
        %v508 = vadd.f32 0.0, %v507
        %v509 = vpop.f32.mrb[0].mxu0
        %510 = vmatprep.mubr.bf16.mxu0 0
        %511 = vmatmul.mubr.bf16.gmra.mrb[0].mxu0 %v464
        %v512 = vpop.f32.mrb[0].mxu0
        %v513 = vadd.f32 0.0, %v512
        %v514 = vpop.f32.mrb[0].mxu0
        %v515 = vpop.f32.mrb[0].mxu0
        %v516 = vpop.f32.mrb[0].mxu0
        %517 = vdwg.mxu0
        %v518 = vlaneseq
        %v519 = vand.u32 %v518, 127
        %vm520 = vcmp.lt.s32.totalorder %v519, 0
        %v521 = vsub.s32 0, %v519
        %v522 = vsel %vm520, %v521, %v519
        %v523 = vshrl.u32 %v522, 5
        %v524 = vand.u32 %v522, 31
        %v525 = vsub.s32 0, %v524
        %v526 = vsel %vm520, %v525, %v524
        %vm527 = vcmp.ne.s32.totalorder %v526, 0
        %vm528 = vcmp.lt.s32.totalorder %v526, 0
        %vm529 = vmand %vm528, %vm527
        %v530 = vadd.s32 %v526, 32
        %v531 = vsel %vm529, %v530, %v526
        %v532 = vlaneseq
        %v533 = vshrl.u32 %v532, 7
        %vm534 = vcmp.eq.s32.totalorder %v531, 0
        %vm535 = vcmask 1047808
        %536 = vrot.lane.b32.xlu0 %v505, 32
        %v537 = vpop.permute.xlu0 %536
        %v538 = vsel %vm535, %v537, %v505
        %539 = vrot.lane.b32.xlu0 %v538, 32
        %v540 = vpop.permute.xlu0 %539
        %v541 = vsel %vm535, %v540, %v505
        %543 = vrot.lane.b32.xlu0 %v541, 97
        %v544 = vpop.permute.xlu0 %543
        %v546 = vsel %vm534, 0.0, %v544
        %vm547 = vcmp.eq.s32.totalorder %v531, 31
        %548 = vrot.lane.b32.xlu0 %v513, 32
        %v549 = vpop.permute.xlu0 %548
        %v550 = vsel %vm535, %v549, %v513
        %551 = vrot.lane.b32.xlu0 %v550, 32
        %v552 = vpop.permute.xlu0 %551
        %v553 = vsel %vm535, %v552, %v513
        %555 = vrot.lane.b32.xlu0 %v553, 127
        %v556 = vpop.permute.xlu0 %555
        %v558 = vsel %vm547, 0.0, %v556
        %v559 = vadd.f32 %v546, %v508
        %v560 = vadd.f32 %v559, %v558
        %v561 = vld [vmem:[%s5] sm:$0xff]
        %563 = vset.pattern.permute.xlu0 0
        %564 = vperm.xlu0 %563, %v561
        %v565 = vpop.permute.xlu0 %564
        %v567 = vadd.f32 %v560, %v565
        %vm568 = vcmp.le.s32.totalorder %v531, %v533
        %v569 = vsel %vm568, %v567, 0.0
        %v570 = vmul.f32 %v569, 0.5
        %v571 = vtanh.pop %v570
        %v572 = vadd.f32 %v571, 1.0
        %v573 = vmul.f32 %v572, 0.5
        %v574 = vmul.f32 %v569, %v573
        %v575 = vpack.c.bf16 %v574, %v574
        %v576 = vld [vmem:[%s6] sm:$0xf]
        %v577 = vld [vmem:[%s6 + $0x4] sm:$0xf]
        %v578 = vld [vmem:[%s6 + $0x8] sm:$0xf]
        %v579 = vld [vmem:[%s6 + $0xc] sm:$0xf]
        %v580 = vld [vmem:[%s7] sm:$0x1]
        %v582 = vlaneseq
        %v583 = vshrl.u32 %v582, 7
        %v584 = vsub.s32 0, %v583
        %v585 = vrot.slane %v580, %v584
        %v591 = vunpack.c.l.b16 %v576
        %v592 = vunpack.c.l.b16 %v577
        %v593 = vunpack.c.l.b16 %v578
        %v594 = vunpack.c.l.b16 %v579
        %v595 = vpack.c.b16 %v592, %v591
        %v596 = vpack.c.b16 %v594, %v593
        %vm599 = vcmask 261120
        %v601 = vsel %vm599, %v575, 0
        %603 = vmatprep.subr.bf16.mxu0 0
        %604 = vmatpush1.bf16.msra.mxu0 %v595
        %605 = vmatprep.subr.bf16.mxu0 0
        %606 = vmatpush1.bf16.msra.mxu0 %v596
        %607 = vmatprep.subr.bf16.mxu0 0
        %608 = vmatpush1.bf16.msra.mxu0 0
        %609 = vmatprep.subr.bf16.mxu0 0
        %610 = vmatpush1.bf16.msra.mxu0 0
        %611 = vmatprep.subr.bf16.mxu0 0
        %612 = vmatpush1.bf16.msra.mxu0 0
        %613 = vmatprep.subr.bf16.mxu0 0
        %614 = vmatpush1.bf16.msra.mxu0 0
        %615 = vmatprep.subr.bf16.mxu0 0
        %616 = vmatpush1.bf16.msra.mxu0 0
        %617 = vmatprep.subr.bf16.mxu0 0
        %618 = vmatpush1.bf16.msra.mxu0 0
        %619 = vmatprep.subr.bf16.mxu0 0
        %620 = vmatpush1.bf16.msra.mxu0 0
        %621 = vmatprep.subr.bf16.mxu0 0
        %622 = vmatpush1.bf16.msra.mxu0 0
        %623 = vmatprep.subr.bf16.mxu0 0
        %624 = vmatpush1.bf16.msra.mxu0 0
        %625 = vmatprep.subr.bf16.mxu0 0
        %626 = vmatpush1.bf16.msra.mxu0 0
        %627 = vmatprep.subr.bf16.mxu0 0
        %628 = vmatpush1.bf16.msra.mxu0 0
        %629 = vmatprep.subr.bf16.mxu0 0
        %630 = vmatpush1.bf16.msra.mxu0 0
        %631 = vmatprep.subr.bf16.mxu0 0
        %632 = vmatpush1.bf16.msra.mxu0 0
        %633 = vmatprep.subr.bf16.mxu0 0
        %634 = vmatpush1.bf16.msra.mxu0 0
        %635 = vmatprep.mubr.bf16.mxu0 0
        %636 = vmatmul.mubr.bf16.gmra.mrb[0].mxu0 %v601
        %v637 = vpop.f32.mrb[0].mxu0
        %v638 = vadd.f32 %v585, %v637
        %v639 = vpop.f32.mrb[0].mxu0
        %v640 = vpop.f32.mrb[0].mxu0
        %v641 = vpop.f32.mrb[0].mxu0
        %642 = vdwg.mxu0
        %v643 = vmax.f32 %v638, 0.0
        %v644 = vand.u32 2147483647, %v638
        %v645 = vsub.f32 0.0, %v644
        %v646 = vmul.f32 %v645, 1.442695
        %v647 = vpow.pop %v646
        %v648 = vadd.f32 %v647, 1.0
        %v649 = vlog2.pop %v648
        %v650 = vmul.f32 %v649, 0.6931472
        %v651 = vadd.f32 %v643, %v650
        %653 = vrot.lane.b32.xlu0 %v638, 112
        %v654 = vpop.permute.xlu0 %653
        %v656 = vmul.f32 %v638, %v654
        %658 = vrot.lane.b32.xlu0 %v656, 96
        %v659 = vpop.permute.xlu0 %658
        %v661 = vsel %vm371, %v659, 0.0
        %662 = vadd.xlane.f32.xlu0 %v661
        %v663 = vpop.xlane.xlu0 %662
        %v664 = vmul.f32 %v574, %v651
        %v665 = vmul.f32 %v664, %v663
        %v666 = vmul.f32 %v442, 0.5
        %v667 = vtanh.pop %v666
        %v668 = vadd.f32 %v667, 1.0
        %v669 = vmul.f32 %v668, 0.5
        %v670 = vmul.f32 %v442, %v669
        %672 = vrot.lane.b32.xlu0 %v670, 96
        %v673 = vpop.permute.xlu0 %672
        %v675 = vmul.f32 %v665, %v673
        %v676 = vpack.c.bf16 %v675, %v675
        %v677 = vld [vmem:[%s8] sm:$0xf]
        %v678 = vld [vmem:[%s8 + $0x4] sm:$0xf]
        %v679 = vld [vmem:[%s8 + $0x8] sm:$0xf]
        %v680 = vld [vmem:[%s8 + $0xc] sm:$0xf]
        %v681 = vld [vmem:[%s9] sm:$0x1]
        %v683 = vlaneseq
        %v684 = vshrl.u32 %v683, 7
        %v685 = vsub.s32 0, %v684
        %v686 = vrot.slane %v681, %v685
        %v692 = vunpack.c.l.b16 %v677
        %v693 = vunpack.c.l.b16 %v678
        %v694 = vunpack.c.l.b16 %v679
        %v695 = vunpack.c.l.b16 %v680
        %v696 = vpack.c.b16 %v693, %v692
        %v697 = vpack.c.b16 %v695, %v694
        %v701 = vsel %vm599, %v676, 0
        %703 = vmatprep.subr.bf16.mxu0 0
        %704 = vmatpush1.bf16.msra.mxu0 %v696
        %705 = vmatprep.subr.bf16.mxu0 0
        %706 = vmatpush1.bf16.msra.mxu0 %v697
        %707 = vmatprep.subr.bf16.mxu0 0
        %708 = vmatpush1.bf16.msra.mxu0 0
        %709 = vmatprep.subr.bf16.mxu0 0
        %710 = vmatpush1.bf16.msra.mxu0 0
        %711 = vmatprep.subr.bf16.mxu0 0
        %712 = vmatpush1.bf16.msra.mxu0 0
        %713 = vmatprep.subr.bf16.mxu0 0
        %714 = vmatpush1.bf16.msra.mxu0 0
        %715 = vmatprep.subr.bf16.mxu0 0
        %716 = vmatpush1.bf16.msra.mxu0 0
        %717 = vmatprep.subr.bf16.mxu0 0
        %718 = vmatpush1.bf16.msra.mxu0 0
        %719 = vmatprep.subr.bf16.mxu0 0
        %720 = vmatpush1.bf16.msra.mxu0 0
        %721 = vmatprep.subr.bf16.mxu0 0
        %722 = vmatpush1.bf16.msra.mxu0 0
        %723 = vmatprep.subr.bf16.mxu0 0
        %724 = vmatpush1.bf16.msra.mxu0 0
        %725 = vmatprep.subr.bf16.mxu0 0
        %726 = vmatpush1.bf16.msra.mxu0 0
        %727 = vmatprep.subr.bf16.mxu0 0
        %728 = vmatpush1.bf16.msra.mxu0 0
        %729 = vmatprep.subr.bf16.mxu0 0
        %730 = vmatpush1.bf16.msra.mxu0 0
        %731 = vmatprep.subr.bf16.mxu0 0
        %732 = vmatpush1.bf16.msra.mxu0 0
        %733 = vmatprep.subr.bf16.mxu0 0
        %734 = vmatpush1.bf16.msra.mxu0 0
        %735 = vmatprep.mubr.bf16.mxu0 0
        %736 = vmatmul.mubr.bf16.gmra.mrb[0].mxu0 %v701
        %v737 = vpop.f32.mrb[0].mxu0
        %v738 = vadd.f32 %v686, %v737
        %v739 = vpop.f32.mrb[0].mxu0
        %v740 = vpop.f32.mrb[0].mxu0
        %v741 = vpop.f32.mrb[0].mxu0
        %742 = vdwg.mxu0
        %743 = vst.msk [vmem:[%s363] sm:$0xff] %vm371, %v738
        %s744 = sand.u32 %s248, 1
        %s745 = scalar_lea.sflag [#allocation4], %s744
        %s746 = sand.u32 %s248, 1
        %s747 = smul.addr %s746, 8
        %s748 = scalar_lea.vmem [#allocation5], %s747
        // Predicated region
        $region65: #{tpu_custom_call.1} parent=59 // pred_check
          %p749 = pneg %p258
        $region66: #{tpu_custom_call.1} parent=59 // pred_check_branch
          %751 = sbr.rel (%p749) target = $region68
        $region67: #{tpu_custom_call.1} parent=59 // pred_region
          %s753 = ssub.s32 128, 128
          %754 = vsyncadd %s745, %s753
          %s755 = smul.addr %s25, 128
          %s756 = scalar_lea.hbm %s10, %s755
          %s758 = sshll.u32 %s748, 4
          %s759 = int_to_ptr.vmem [resolvable:$true] %s758
          %761 = dma.vmem_to_hbm [thread:$0]  %s759, 128, %s756, %s745
        $region68: #{tpu_custom_call.1} parent=59 // pred_fallthru
          _
      $region60: #{tpu_custom_call.1} parent=5 // pred_fallthru
        _
      %p762 = scmp.le.s32.totalorder 2, %s20
      // Predicated region
      $region69: #{tpu_custom_call.1} parent=5 // pred_check
        %p763 = pneg %p762
      $region70: #{tpu_custom_call.1} parent=5 // pred_check_branch
        %765 = sbr.rel (%p763) target = $region72
      $region71: #{tpu_custom_call.1} parent=5 // pred_region
        %s766 = ssub.s32 %s20, 2
        // Predicated region
        $region73: #{tpu_custom_call.1} parent=71 // pred_check
          %p767 = pneg %p264
        $region74: #{tpu_custom_call.1} parent=71 // pred_check_branch
          %769 = sbr.rel (%p767) target = $region76
        $region75: #{tpu_custom_call.1} parent=71 // pred_region
          %s770 = sand.u32 %s249, 1
          %s771 = scalar_lea.sflag [#allocation4], %s770
          %s772 = sand.u32 %s249, 1
          %s773 = smul.addr %s772, 8
          %s774 = scalar_lea.vmem [#allocation5], %s773
          %775 = dma.done %s771, 128
        $region76: #{tpu_custom_call.1} parent=71 // pred_fallthru
          _
      $region72: #{tpu_custom_call.1} parent=5 // pred_fallthru
        _
    $region6: #{tpu_custom_call.1} parent=1 // loop_footer
      %s24 = sadd.s32 1, %s20
    $region7: #{tpu_custom_call.1} parent=1 // loop_footer_branch
      %19 = sbr.rel target = $region3
    $region8: #{tpu_custom_call.1} parent=1 // loop_exit
      _
    %776 = vsyncpa [#allocation3], 1
    %s777 = scalar_lea.sflag [#allocation3], 1
    %778 = vsyncpa %s777, 1
    %779 = vsyncpa [#allocation4], 1
    %s780 = scalar_lea.sflag [#allocation4], 1
    %781 = vsyncpa %s780, 1

</llo_original>
